<compile_context>
chip_gen: v7x
topology: tpu7x:2x2x1
jax: 0.10.0
libtpu: 0.0.40
codegen_flags: <defaults>
</compile_context>

<pallas_src>
import math

import jax
import jax.numpy as jnp
from jax.experimental import pallas as pl
from jax.experimental.pallas import tpu as pltpu

_LANE = 128
_SUBLANE = 8


def _round_up(x, m):
    return ((x + m - 1) // m) * m


def _round_down(x, m):
    return (x // m) * m


def _cdiv(a, b):
    return (a + b - 1) // b


def _make_kernel(f_total, tf, need_mask):
    def kernel(b_ref, x_ref, w_ref, o_ref):
        # b_ref: (1,)      SMEM scalar bias
        # x_ref: (tb, tf)  VMEM batch/feature tile (pipelined)
        # w_ref: (1, tf)   VMEM lane-dense weight chunk (resident if tf == F)
        # o_ref: (1, tb)   VMEM lane-dense output row (resident across F chunks)
        k = pl.program_id(1)

        xv = x_ref[...].astype(jnp.float32)          # in-kernel upcast if bf16 input
        prod = xv * w_ref[...]                       # VPU; w broadcasts over sublanes
        if need_mask:                                # static: only when F % tf != 0
            lane = jax.lax.broadcasted_iota(jnp.int32, prod.shape, 1)
            prod = jnp.where(lane + k * tf < f_total, prod, jnp.float32(0))
        s = jnp.sum(prod, axis=-1)                   # XLU lane reduce -> (tb,)
        row = s.reshape(1, s.shape[0])               # sublane->lane relayout -> (1, tb)

        @pl.when(k == 0)
        def _init():
            o_ref[...] = row + b_ref[0]              # bias added exactly once

        @pl.when(k != 0)
        def _accum():
            o_ref[...] += row                        # f32 accumulate across F chunks

    return kernel


def subnet_forward(x, weight, bias, *,
                   vmem_budget_bytes=10 * 1024 * 1024,
                   batch_tile=None, f_chunk=None):
    """
    x:      (B, num_peak, num_tf)       float32 or bf16
    weight: (1, num_peak*num_tf)        nn.Linear.weight layout
    bias:   (1,)                        nn.Linear.bias layout
    returns (B, 1) float32
    """
    B = x.shape[0]
    F = math.prod(x.shape[1:])

    x_flat = x.reshape(B, F)                         # keep source dtype (no HBM copy)
    w = weight.reshape(1, F).astype(jnp.float32)     # tiny; lane-dense, NO transpose
    b = bias.reshape(1).astype(jnp.float32)          # scalar -> SMEM

    itemsize = jnp.dtype(x_flat.dtype).itemsize

    # ---- F chunking: only when a 128-row double-buffered tile of full F would
    # blow the VMEM budget (standard P3 accumulator; single chunk for small F).
    if f_chunk is not None:
        tf = min(int(f_chunk), F)
    else:
        max_tf = max(_LANE, _round_down(vmem_budget_bytes // (2 * 128 * itemsize), _LANE))
        tf = F if _round_up(F, _LANE) <= max_tf else max_tf
    grid_f = _cdiv(F, tf)
    if grid_f > 1:
        tf = _round_up(tf, _LANE)                    # lane-aligned chunks
        grid_f = _cdiv(F, tf)
    need_mask = (F % tf) != 0                        # ragged last F chunk

    # ---- Batch tile from the VMEM budget (2 double-buffered x tiles).
    row_bytes = _round_up(tf, _LANE) * itemsize
    if batch_tile is not None:
        tb = max(_SUBLANE, int(batch_tile))
    else:
        tb_budget = max(_LANE, _round_down(vmem_budget_bytes // (2 * row_bytes), _LANE))
        # Aim for >=4 batch tiles when B is large so "parallel" can shard
        # across both v7x TensorCores; never below 512 rows per tile.
        tb_split = max(512, _round_up(_cdiv(B, 4), _LANE))
        tb = min(tb_budget, tb_split)
    if _round_up(B, _SUBLANE) <= tb:
        tb = _round_up(B, _SUBLANE)                  # whole batch in one tile
    else:
        tb = _round_up(tb, _LANE)                    # (1, tb) out blocks need tb % 128 == 0
    grid_b = _cdiv(B, tb)                            # ragged tail block; no padding pass
    Bp = grid_b * tb

    out = pl.pallas_call(
        _make_kernel(F, tf, need_mask),
        out_shape=jax.ShapeDtypeStruct((1, Bp), jnp.float32),
        grid_spec=pltpu.PrefetchScalarGridSpec(
            num_scalar_prefetch=0,
            grid=(grid_b, grid_f),                   # reduction axis (F chunks) last
            in_specs=[
                pl.BlockSpec(memory_space=pltpu.MemorySpace.SMEM),   # bias scalar
                pl.BlockSpec((tb, tf), lambda i, k: (i, k)),         # x tile
                pl.BlockSpec((1, tf), lambda i, k: (0, k)),          # weight chunk
            ],
            out_specs=pl.BlockSpec((1, tb), lambda i, k: (0, i)),    # lane-dense row
        ),
        compiler_params=pltpu.CompilerParams(
            dimension_semantics=("parallel", "arbitrary"),
        ),
    )(b, x_flat, w)

    return out[0, :B].reshape(B, 1)


if __name__ == "__main__":
    def _ref(x, w, b):
        xf = x.reshape(x.shape[0], -1).astype(jnp.float32)
        return xf @ w.reshape(1, -1).T.astype(jnp.float32) + b.reshape(1, 1)

    def _make(key, B, num_peak, num_tf):
        F = num_peak * num_tf
        kx, kw, kb = jax.random.split(key, 3)
        x = jax.random.normal(kx, (B, num_peak, num_tf), dtype=jnp.float32)
        bound = 1.0 / math.sqrt(F)                   # mimic nn.Linear uniform init
        w = jax.random.uniform(kw, (1, F), minval=-bound, maxval=bound, dtype=jnp.float32)
        b = jax.random.uniform(kb, (1,), minval=-bound, maxval=bound, dtype=jnp.float32)
        return x, w, b

    key = jax.random.PRNGKey(0)

    # Case 1: module-scale shapes (num_peak=4 cCREs, num_tf=8 TFs), single tile/chunk.
    x, w, b = _make(key, 2, 4, 8)
    y = jax.block_until_ready(subnet_forward(x, w, b))
    assert y.shape == (2, 1)
    assert jnp.allclose(y, _ref(x, w, b), atol=1e-5, rtol=1e-5)

    # Case 2: ragged batch + multiple batch tiles (no padding pass over x).
    x2, w2, b2 = _make(jax.random.PRNGKey(1), 300, 4, 8)
    y2 = jax.block_until_ready(subnet_forward(x2, w2, b2, batch_tile=128))
    assert y2.shape == (300, 1)
    assert jnp.allclose(y2, _ref(x2, w2, b2), atol=1e-5, rtol=1e-5)

    # Case 3: F-chunked accumulation with a ragged (masked) last chunk (F = 320).
    x3, w3, b3 = _make(jax.random.PRNGKey(2), 64, 20, 16)
    y3 = jax.block_until_ready(subnet_forward(x3, w3, b3, f_chunk=128))
    assert y3.shape == (64, 1)
    assert jnp.allclose(y3, _ref(x3, w3, b3), atol=1e-5, rtol=1e-5)

    print("KERNEL_OK")
</pallas_src>

<mosaic_0001>
module attributes {stable_mosaic.version = 11 : i64} {
  func.func @kernel(%arg0: i32, %arg1: i32, %arg2: memref<1xf32, #tpu.memory_space<smem>>, %arg3: memref<8x32xf32, #tpu.memory_space<vmem>>, %arg4: memref<1x32xf32, #tpu.memory_space<vmem>>, %arg5: memref<1x8xf32, #tpu.memory_space<vmem>>) attributes {dimension_semantics = [#tpu.dimension_semantics<parallel>, #tpu.dimension_semantics<arbitrary>], iteration_bounds = array<i64: 1, 1>, scalar_prefetch = 0 : i64, scratch_operands = 0 : i64, tpu.core_type = #tpu.core_type<tc>, window_params = [{transform_indices = @transform_0, window_bounds = array<i64: 1>}, {transform_indices = @transform_1, window_bounds = array<i64: 8, 32>}, {transform_indices = @transform_2, window_bounds = array<i64: 1, 32>}, {transform_indices = @transform_3, window_bounds = array<i64: 1, 8>}]} {
    %c0 = arith.constant 0 : index
    %c0_0 = arith.constant 0 : index
    %0 = vector.load %arg3[%c0, %c0_0] : memref<8x32xf32, #tpu.memory_space<vmem>>, vector<8x32xf32>
    %c0_1 = arith.constant 0 : index
    %c0_2 = arith.constant 0 : index
    %1 = vector.load %arg4[%c0_1, %c0_2] : memref<1x32xf32, #tpu.memory_space<vmem>>, vector<1x32xf32>
    %2 = vector.broadcast %1 : vector<1x32xf32> to vector<8x32xf32>
    %3 = arith.mulf %0, %2 : vector<8x32xf32>
    %cst = arith.constant dense<0.000000e+00> : vector<8xf32>
    %4 = vector.multi_reduction <add>, %3, %cst [1] : vector<8x32xf32> to vector<8xf32>
    %5 = vector.shape_cast %4 : vector<8xf32> to vector<1x8xf32>
    %c0_i32 = arith.constant 0 : i32
    %6 = arith.cmpi eq, %arg1, %c0_i32 : i32
    %7 = arith.extui %6 : i1 to i32
    %c0_i32_3 = arith.constant 0 : i32
    %8 = arith.cmpi ne, %7, %c0_i32_3 : i32
    scf.if %8 {
      %c0_6 = arith.constant 0 : index
      %12 = memref.load %arg2[%c0_6] : memref<1xf32, #tpu.memory_space<smem>>
      %13 = vector.broadcast %12 : f32 to vector<1x8xf32>
      %14 = arith.addf %5, %13 : vector<1x8xf32>
      %c0_7 = arith.constant 0 : index
      %c0_8 = arith.constant 0 : index
      %15 = vector.load %arg5[%c0_7, %c0_8] : memref<1x8xf32, #tpu.memory_space<vmem>>, vector<1x8xf32>
      tpu.vector_store %arg5[%c0_7, %c0_8], %14 {strides = array<i32>} : memref<1x8xf32, #tpu.memory_space<vmem>>, vector<1x8xf32>,
    } else {
    }
    %c0_i32_4 = arith.constant 0 : i32
    %9 = arith.cmpi ne, %arg1, %c0_i32_4 : i32
    %10 = arith.extui %9 : i1 to i32
    %c0_i32_5 = arith.constant 0 : i32
    %11 = arith.cmpi ne, %10, %c0_i32_5 : i32
    scf.if %11 {
      %c0_6 = arith.constant 0 : index
      %c0_7 = arith.constant 0 : index
      %12 = vector.load %arg5[%c0_6, %c0_7] : memref<1x8xf32, #tpu.memory_space<vmem>>, vector<1x8xf32>
      %13 = arith.addf %12, %5 : vector<1x8xf32>
      %c0_8 = arith.constant 0 : index
      %c0_9 = arith.constant 0 : index
      %14 = vector.load %arg5[%c0_8, %c0_9] : memref<1x8xf32, #tpu.memory_space<vmem>>, vector<1x8xf32>
      tpu.vector_store %arg5[%c0_8, %c0_9], %13 {strides = array<i32>} : memref<1x8xf32, #tpu.memory_space<vmem>>, vector<1x8xf32>,
    } else {
    }
    return
  }
  func.func @transform_0(%arg0: i32, %arg1: i32) -> i32 {
    %c0_i32 = arith.constant 0 : i32
    %c0_i32_0 = arith.constant 0 : i32
    return %c0_i32 : i32
  }
  func.func @transform_1(%arg0: i32, %arg1: i32) -> (i32, i32) {
    %c0_i32 = arith.constant 0 : i32
    return %arg0, %arg1 : i32, i32
  }
  func.func @transform_2(%arg0: i32, %arg1: i32) -> (i32, i32) {
    %c0_i32 = arith.constant 0 : i32
    %c0_i32_0 = arith.constant 0 : i32
    return %c0_i32, %arg1 : i32, i32
  }
  func.func @transform_3(%arg0: i32, %arg1: i32) -> (i32, i32) {
    %c0_i32 = arith.constant 0 : i32
    %c0_i32_0 = arith.constant 0 : i32
    return %c0_i32, %arg0 : i32, i32
  }
}

</mosaic_0001>

<llo_original>
// kernel: tpu_custom_call.1
$region0: #{tpu_custom_call.1}
  #allocation0 [shape = 'u32[]', space=smem, size = 0x4, offset = 0x4, fixed_abs, tag = 'smem constant byte address 0x4 - core index']
  #allocation1 [shape = 'u32[144,128]{1,0:T(1,128)}', space=vmem, size = 0x12000, scoped, tag = 'internal scratch']
  #allocation2 [shape = 'f32[1]{0:T(128)S(6)}', space=smem, size = 0x200, scoped, tag = 'scoped memory for tpu_custom_call.1']
  %s0 = inlined_call_operand.<no memory space> [shape: f32[1], index: 0, kind: input, shape index: {}]
  %s1 = inlined_call_operand.vmem [shape: f32[2,32], index: 1, kind: input, shape index: {}]
  %s2 = inlined_call_operand.vmem [shape: f32[1,32], index: 2, kind: input, shape index: {}]
  %s3 = inlined_call_operand.hbm [shape: f32[1,8], index: 3, kind: output, shape index: {}]
  %s4 = sld [smem:[#allocation0]]
  $region30: #{tpu_custom_call.1} parent=0
    _
  %s6 = ssub.s32 1, %s4
  %s7 = scalar_select 0, %s6, %s4
  %8 = sst [smem:[#allocation2]] %s0
  $region1: #{tpu_custom_call.1} parent=0
    #allocation3 [shape = 'u8[512]{0}', space=vmem, size = 0x400, scoped, tag = 'output window, operand 0, single buffered']
    #allocation4 [shape = 's32[1]{0}', space=sflag, size = 0x4, scoped, tag = 'scoped memory for tpu_custom_call.1']
    %9 = vsyncpa [#allocation4], 0
    // Predicated region
    $region2: #{tpu_custom_call.1} parent=1 // pred_check
      _
    $region3: #{tpu_custom_call.1} parent=1 // pred_check_branch
      %11 = sbr.rel (0) target = $region5
    $region4: #{tpu_custom_call.1} parent=1 // pred_region
      _
    $region5: #{tpu_custom_call.1} parent=1 // pred_fallthru
      _
    // Predicated region
    $region6: #{tpu_custom_call.1} parent=1 // pred_check
      _
    $region7: #{tpu_custom_call.1} parent=1 // pred_check_branch
      %13 = sbr.rel (0) target = $region9
    $region8: #{tpu_custom_call.1} parent=1 // pred_region
      _
    $region9: #{tpu_custom_call.1} parent=1 // pred_fallthru
      _
    // Predicated region
    $region10: #{tpu_custom_call.1} parent=1 // pred_check
      _
    $region11: #{tpu_custom_call.1} parent=1 // pred_check_branch
      %15 = sbr.rel (0) target = $region13
    $region12: #{tpu_custom_call.1} parent=1 // pred_region
      _
    $region13: #{tpu_custom_call.1} parent=1 // pred_fallthru
      _
    %v16 = vld [vmem:[%s1] sm:$0xff]
    %v17 = vld [vmem:[%s2] sm:$0x1]
    %v19 = vlaneseq
    %v20 = vshrl.u32 %v19, 7
    %v21 = vsub.s32 0, %v20
    %v22 = vrot.slane %v17, %v21
    %v24 = vmul.f32 %v16, %v22
    %vm25 = vcmask 261120
    %v26 = vsel %vm25, %v24, 0.0
    %27 = vadd.xlane.f32.xlu0 %v26
    %v28 = vpop.xlane.xlu0 %27
    %p29 = scmp.eq.s32.totalorder 0, 0
    // Predicated region
    $region14: #{tpu_custom_call.1} parent=1 // pred_check
      %p30 = pneg %p29
    $region15: #{tpu_custom_call.1} parent=1 // pred_check_branch
      %32 = sbr.rel (%p30) target = $region17
    $region16: #{tpu_custom_call.1} parent=1 // pred_region
      %s33 = sld [smem:[#allocation2]]
      %v34 = vstv %s33
      %v35 = vadd.f32 %v28, %v34
      %v37 = vlaneseq
      %v38 = vand.u32 %v37, 127
      %v39 = vlaneseq
      %v40 = vshrl.u32 %v39, 7
      %v41 = vsub.s32 %v38, %v40
      %v42 = vrot.slane %v35, %v41
      %vm44 = vcmask 57344
      %45 = vst.msk [vmem:[#allocation3] sm:$0x1] %vm44, %v42
    $region17: #{tpu_custom_call.1} parent=1 // pred_fallthru
      _
    %p46 = scmp.ne.s32.totalorder 0, 0
    // Predicated region
    $region18: #{tpu_custom_call.1} parent=1 // pred_check
      %p47 = pneg %p46
    $region19: #{tpu_custom_call.1} parent=1 // pred_check_branch
      %49 = sbr.rel (%p47) target = $region21
    $region20: #{tpu_custom_call.1} parent=1 // pred_region
      %v50 = vld [vmem:[#allocation3] sm:$0x1]
      %v52 = vlaneseq
      %v53 = vshrl.u32 %v52, 7
      %v54 = vsub.s32 0, %v53
      %v55 = vrot.slane %v28, %v54
      %v56 = vlaneseq
      %v57 = vshrl.u32 %v56, 7
      %v58 = vsub.s32 1, %v57
      %v59 = vrot.slane %v28, %v58
      %v60 = vlaneseq
      %v61 = vshrl.u32 %v60, 7
      %v62 = vsub.s32 2, %v61
      %v63 = vrot.slane %v28, %v62
      %v64 = vlaneseq
      %v65 = vshrl.u32 %v64, 7
      %v66 = vsub.s32 3, %v65
      %v67 = vrot.slane %v28, %v66
      %v68 = vlaneseq
      %v69 = vshrl.u32 %v68, 7
      %v70 = vsub.s32 4, %v69
      %v71 = vrot.slane %v28, %v70
      %v72 = vlaneseq
      %v73 = vshrl.u32 %v72, 7
      %v74 = vsub.s32 5, %v73
      %v75 = vrot.slane %v28, %v74
      %v76 = vlaneseq
      %v77 = vshrl.u32 %v76, 7
      %v78 = vsub.s32 6, %v77
      %v79 = vrot.slane %v28, %v78
      %v80 = vlaneseq
      %v81 = vshrl.u32 %v80, 7
      %v82 = vsub.s32 7, %v81
      %v83 = vrot.slane %v28, %v82
      %v84 = vcombine.low %v55, %v59
      %v85 = vcombine.low %v63, %v67
      %v86 = vcombine.low %v71, %v75
      %v87 = vcombine.low %v79, %v83
      %v89 = vunpack.c.l.s4 1966171168
      %v90 = vunpack.c.0.s8 %v89
      %v91 = vlaneseq
      %v92 = vshrl.u32 %v91, 7
      %v93 = vsub.s32 %v90, %v92
      %v94 = vrot.slane %v84, %v93
      %v96 = vunpack.c.l.s4 1966171168
      %v97 = vunpack.c.0.s8 %v96
      %v98 = vlaneseq
      %v99 = vshrl.u32 %v98, 7
      %v100 = vsub.s32 %v97, %v99
      %v101 = vrot.slane %v85, %v100
      %v103 = vunpack.c.l.s4 1966171168
      %v104 = vunpack.c.0.s8 %v103
      %v105 = vlaneseq
      %v106 = vshrl.u32 %v105, 7
      %v107 = vsub.s32 %v104, %v106
      %v108 = vrot.slane %v86, %v107
      %v110 = vunpack.c.l.s4 1966171168
      %v111 = vunpack.c.0.s8 %v110
      %v112 = vlaneseq
      %v113 = vshrl.u32 %v112, 7
      %v114 = vsub.s32 %v111, %v113
      %v115 = vrot.slane %v87, %v114
      %v116 = vcombine.low %v94, %v101
      %v117 = vcombine.low %v108, %v115
      %v119 = vunpack.c.l.s4 1966171168
      %v120 = vunpack.c.0.s8 %v119
      %v121 = vlaneseq
      %v122 = vshrl.u32 %v121, 7
      %v123 = vsub.s32 %v120, %v122
      %v124 = vrot.slane %v116, %v123
      %v126 = vunpack.c.l.s4 1966171168
      %v127 = vunpack.c.0.s8 %v126
      %v128 = vlaneseq
      %v129 = vshrl.u32 %v128, 7
      %v130 = vsub.s32 %v127, %v129
      %v131 = vrot.slane %v117, %v130
      %v132 = vcombine.low %v124, %v131
      %133 = vset.pattern.permute.xlu0 0
      %134 = vperm.xlu0 %133, %v132
      %v135 = vpop.permute.xlu0 %134
      %v136 = vlaneseq
      %v137 = vand.u32 %v136, 127
      %v138 = vlaneseq
      %v139 = vshrl.u32 %v138, 7
      %v140 = vsub.s32 %v137, %v139
      %v141 = vrot.slane %v135, %v140
      %v143 = vunpack.c.l.s4 1966171168
      %v144 = vunpack.c.0.s8 %v143
      %v145 = vlaneseq
      %v146 = vshrl.u32 %v145, 7
      %v147 = vsub.s32 %v144, %v146
      %v148 = vrot.slane %v141, %v147
      %v150 = vunpack.c.l.s4 1966171168
      %v151 = vunpack.c.0.s8 %v150
      %v152 = vlaneseq
      %v153 = vshrl.u32 %v152, 7
      %v154 = vsub.s32 %v151, %v153
      %v155 = vrot.slane %v148, %v154
      %v157 = vadd.f32 %v50, %v155
      %vm158 = vcmask 57344
      %159 = vst.msk [vmem:[#allocation3] sm:$0x1] %vm158, %v157
    $region21: #{tpu_custom_call.1} parent=1 // pred_fallthru
      _
    // Predicated region
    $region22: #{tpu_custom_call.1} parent=1 // pred_check
      _
    $region23: #{tpu_custom_call.1} parent=1 // pred_check_branch
      %161 = sbr.rel (0) target = $region25
    $region24: #{tpu_custom_call.1} parent=1 // pred_region
      %s163 = ssub.s32 16, 16
      %164 = vsyncadd [#allocation4], %s163
      %s166 = sshll.u32 [#allocation3], 4
      %s167 = int_to_ptr.vmem [resolvable:$true] %s166
      %169 = dma.vmem_to_hbm [thread:$0]  %s167, 16, %s3, [#allocation4]
    $region25: #{tpu_custom_call.1} parent=1 // pred_fallthru
      _
    // Predicated region
    $region26: #{tpu_custom_call.1} parent=1 // pred_check
      _
    $region27: #{tpu_custom_call.1} parent=1 // pred_check_branch
      %171 = sbr.rel (0) target = $region29
    $region28: #{tpu_custom_call.1} parent=1 // pred_region
      %172 = dma.done [#allocation4], 16
    $region29: #{tpu_custom_call.1} parent=1 // pred_fallthru
      _
    %173 = vsyncpa [#allocation4], 1

</llo_original>
